<compile_context>
chip_gen: v6e
topology: v6e:2x2x1
jax: 0.10.0
libtpu: 0.0.40
codegen_flags: <defaults>
</compile_context>

<pallas_src>
import jax
import jax.numpy as jnp
from jax.experimental import pallas as pl
from jax.experimental.pallas import tpu as pltpu


def mbconv_residual_kernel(x_ref, w_ref, b_ref, o_ref):
    """Fused 1x1-conv + bias + residual on one (C, T) spatial tile.

    x_ref: (C, T)  input tile: channels on sublanes, spatial on lanes
    w_ref: (C, C)  1x1-conv weight, laid out (C_out, C_in)
    b_ref: (C, 1)  bias
    o_ref: (C, T)  output tile
    """
    c = x_ref.shape[0]
    bias = b_ref[...].astype(jnp.float32)  # (C, 1), lane-broadcasts

    if c <= 8:
        # Tiny channel count: a lane-wide FMA chain on the VPU beats pushing a
        # K=C matmul through the MXU.  Weight is loaded & cast once; each term
        # uses a narrow (1, T) row load from VMEM (no sublane extraction of a
        # materialized f32 tile).  Residual + bias seed the accumulator.
        wf = w_ref[...].astype(jnp.float32)
        acc = x_ref[...].astype(jnp.float32) + bias
        for ci in range(c):
            acc = acc + wf[:, ci:ci + 1] * x_ref[ci:ci + 1, :].astype(jnp.float32)
        o_ref[...] = acc.astype(o_ref.dtype)
    else:
        # Realistic channel counts: MXU matmul with f32 accumulation.  The
        # residual add is fused into the store expression (no persistent f32
        # copy of the input tile).
        y = jnp.dot(w_ref[...], x_ref[...], preferred_element_type=jnp.float32)
        o_ref[...] = (y + bias + x_ref[...].astype(jnp.float32)).astype(o_ref.dtype)


def _vmem_capacity_bytes() -> int:
    """Best-effort trace-time query of per-core VMEM; conservative fallback."""
    try:
        info = pltpu.get_tpu_info()
        cap = getattr(info, "vmem_capacity_bytes", None)
        if cap:
            return int(cap)
    except Exception:
        pass
    return 64 << 20  # assume the smallest (v7x-class) VMEM if unknown


def mbconv_residual(x_nchw, w, b):
    """x_nchw: (N, C, H, W); w: (C_out=C, C_in=C) 1x1-conv weight; b: (C,).

    NOTE: callers holding the PyTorch (C, C, 1, 1) conv weight must squeeze
    the trailing singleton dims first.
    """
    N, C, H, W = x_nchw.shape
    hw = H * W
    itemsize = jnp.dtype(x_nchw.dtype).itemsize

    # ---- generation-aware VMEM budget --------------------------------------
    vmem_cap = _vmem_capacity_bytes()
    if vmem_cap <= (64 << 20):
        hard_cap = 36 << 20          # v7x: 64 MiB physical -> stay well under
    else:
        hard_cap = 64 << 20          # v5e / v6e: 128 MiB physical

    w_bytes = C * C * itemsize
    # Single-buffer large resident weights (constant index map would otherwise
    # still get 2 buffers).  Gated so small-C configs keep the plain spec.
    w_bufs = 1 if w_bytes >= (2 << 20) else 2

    # Bytes per spatial column held in VMEM: 4 double-buffered I/O blocks at
    # the input itemsize + ~2 f32 in-kernel temporaries (matmul acc + streamed
    # residual operand).
    per_col_bytes = C * (4 * itemsize + 8)
    col_budget = hard_cap - w_bufs * w_bytes - (4 << 20)   # compiler headroom

    # ---- spatial (lane) tile ------------------------------------------------
    if hw <= 128:
        # Full-extent tile (legal regardless of 128-divisibility); no masking.
        tile_hw = hw
        num_tiles = 1
    else:
        lane = 512 if hw >= 512 else 128        # 512-aligned tiles feed the MXU
        tile_cap = max(lane, (max(col_budget, 0) // per_col_bytes) // lane * lane)
        hw_ceil = pl.cdiv(hw, 128) * 128
        tile_hw = min(tile_cap, hw_ceil)
        num_tiles = pl.cdiv(hw, tile_hw)

        # Guarantee enough grid steps to feed both v7x TensorCores (and give
        # the pipeline something to overlap); harmless on 1-TC chips.
        MIN_STEPS = 4
        if N * num_tiles < MIN_STEPS:
            want_tiles = min(pl.cdiv(MIN_STEPS, N), pl.cdiv(hw, 128))
            tile_hw = max(128, pl.cdiv(pl.cdiv(hw, want_tiles), 128) * 128)
            num_tiles = pl.cdiv(hw, tile_hw)

    # ---- VMEM accounting (I/O double buffers + f32 temps + weights) ---------
    block_bytes = C * tile_hw * itemsize
    f32_tmp_bytes = 2 * C * tile_hw * 4
    vmem_needed = (4 * block_bytes + f32_tmp_bytes + w_bufs * w_bytes
                   + 2 * C * itemsize + (2 << 20))
    vmem_limit = int(min(max(vmem_needed, 16 << 20), hard_cap))

    x3 = x_nchw.reshape(N, C, hw)     # no padding: ragged last tile is masked
    b2 = b.reshape(C, 1)

    cost = pl.CostEstimate(
        flops=2 * N * hw * C * C,
        transcendentals=0,
        bytes_accessed=(2 * N * C * hw + C * C + C) * itemsize,
    )

    if w_bufs == 1:
        w_spec = pl.BlockSpec((C, C), lambda n, j: (0, 0),
                              pipeline_mode=pl.Buffered(1))
    else:
        w_spec = pl.BlockSpec((C, C), lambda n, j: (0, 0))
    b_spec = pl.BlockSpec((C, 1), lambda n, j: (0, 0))

    out3 = pl.pallas_call(
        mbconv_residual_kernel,
        out_shape=jax.ShapeDtypeStruct((N, C, hw), x_nchw.dtype),
        grid_spec=pltpu.PrefetchScalarGridSpec(
            num_scalar_prefetch=0,
            grid=(N, num_tiles),
            in_specs=[
                # x tile: batch squeezed, channels on sublanes, spatial on lanes.
                pl.BlockSpec((None, C, tile_hw), lambda n, j: (n, 0, j)),
                w_spec,
                b_spec,
            ],
            out_specs=pl.BlockSpec((None, C, tile_hw), lambda n, j: (n, 0, j)),
        ),
        compiler_params=pltpu.CompilerParams(
            dimension_semantics=("parallel", "parallel"),
            vmem_limit_bytes=vmem_limit,
        ),
        cost_estimate=cost,
    )(x3, w, b2)

    return out3.reshape(N, C, H, W)


def reference(x_nchw, w, b):
    """Pure-JAX reference: 1x1 conv (NCHW) + bias + residual."""
    y = jnp.einsum("oc,nchw->nohw", w, x_nchw) + b[None, :, None, None]
    return y + x_nchw


if __name__ == "__main__":
    key = jax.random.PRNGKey(0)
    kx, kw, kb = jax.random.split(key, 3)

    N, C, H, W = 2, 4, 16, 16
    x = jax.random.normal(kx, (N, C, H, W), dtype=jnp.float32)
    # Deterministic 1x1 conv parameters (fn = Conv2d(C, C, kernel_size=1)).
    w = jax.random.normal(kw, (C, C), dtype=jnp.float32) * 0.1
    b = jax.random.normal(kb, (C,), dtype=jnp.float32) * 0.1

    out = jax.block_until_ready(mbconv_residual(x, w, b))
    ref = reference(x, w, b)

    assert out.shape == (N, C, H, W)
    assert jnp.allclose(out, ref, atol=1e-5, rtol=1e-5), "mismatch vs reference"

    print("KERNEL_OK")
</pallas_src>

<mosaic_0001>
module attributes {stable_mosaic.version = 11 : i64} {
  func.func @mbconv_residual_kernel(%arg0: i32, %arg1: i32, %arg2: memref<1x4x128xf32, #tpu.memory_space<vmem>>, %arg3: memref<4x4xf32, #tpu.memory_space<vmem>>, %arg4: memref<4x1xf32, #tpu.memory_space<vmem>>, %arg5: memref<1x4x128xf32, #tpu.memory_space<vmem>>) attributes {dimension_semantics = [#tpu.dimension_semantics<parallel>, #tpu.dimension_semantics<parallel>], iteration_bounds = array<i64: 2, 2>, scalar_prefetch = 0 : i64, scratch_operands = 0 : i64, tpu.core_type = #tpu.core_type<tc>, window_params = [{transform_indices = @transform_0, window_bounds = array<i64: 1, 4, 128>}, {pipeline_mode = #tpu.pipeline_mode<synchronous>, transform_indices = @transform_1, window_bounds = array<i64: 4, 4>}, {pipeline_mode = #tpu.pipeline_mode<synchronous>, transform_indices = @transform_2, window_bounds = array<i64: 4, 1>}, {transform_indices = @transform_3, window_bounds = array<i64: 1, 4, 128>}]} {
    %c0 = arith.constant 0 : index
    %c0_0 = arith.constant 0 : index
    %0 = vector.load %arg4[%c0, %c0_0] : memref<4x1xf32, #tpu.memory_space<vmem>>, vector<4x1xf32>
    %c0_1 = arith.constant 0 : index
    %c0_2 = arith.constant 0 : index
    %1 = vector.load %arg3[%c0_1, %c0_2] : memref<4x4xf32, #tpu.memory_space<vmem>>, vector<4x4xf32>
    %c0_3 = arith.constant 0 : index
    %c0_4 = arith.constant 0 : index
    %c0_5 = arith.constant 0 : index
    %2 = vector.load %arg2[%c0_3, %c0_4, %c0_5] : memref<1x4x128xf32, #tpu.memory_space<vmem>>, vector<1x4x128xf32>
    %3 = vector.shape_cast %2 : vector<1x4x128xf32> to vector<4x128xf32>
    %4 = vector.broadcast %0 : vector<4x1xf32> to vector<4x128xf32>
    %5 = arith.addf %3, %4 : vector<4x128xf32>
    %6 = vector.extract_strided_slice %1 {offsets = [0, 0], sizes = [4, 1], strides = [1, 1]} : vector<4x4xf32> to vector<4x1xf32>
    %c0_6 = arith.constant 0 : index
    %c0_7 = arith.constant 0 : index
    %c0_8 = arith.constant 0 : index
    %7 = vector.load %arg2[%c0_6, %c0_7, %c0_8] : memref<1x4x128xf32, #tpu.memory_space<vmem>>, vector<1x1x128xf32>
    %8 = vector.shape_cast %7 : vector<1x1x128xf32> to vector<1x128xf32>
    %9 = vector.broadcast %6 : vector<4x1xf32> to vector<4x128xf32>
    %10 = vector.broadcast %8 : vector<1x128xf32> to vector<4x128xf32>
    %11 = arith.mulf %9, %10 : vector<4x128xf32>
    %12 = arith.addf %5, %11 : vector<4x128xf32>
    %13 = vector.extract_strided_slice %1 {offsets = [0, 1], sizes = [4, 1], strides = [1, 1]} : vector<4x4xf32> to vector<4x1xf32>
    %c0_9 = arith.constant 0 : index
    %c1 = arith.constant 1 : index
    %c0_10 = arith.constant 0 : index
    %14 = vector.load %arg2[%c0_9, %c1, %c0_10] : memref<1x4x128xf32, #tpu.memory_space<vmem>>, vector<1x1x128xf32>
    %15 = vector.shape_cast %14 : vector<1x1x128xf32> to vector<1x128xf32>
    %16 = vector.broadcast %13 : vector<4x1xf32> to vector<4x128xf32>
    %17 = vector.broadcast %15 : vector<1x128xf32> to vector<4x128xf32>
    %18 = arith.mulf %16, %17 : vector<4x128xf32>
    %19 = arith.addf %12, %18 : vector<4x128xf32>
    %20 = vector.extract_strided_slice %1 {offsets = [0, 2], sizes = [4, 1], strides = [1, 1]} : vector<4x4xf32> to vector<4x1xf32>
    %c0_11 = arith.constant 0 : index
    %c2 = arith.constant 2 : index
    %c0_12 = arith.constant 0 : index
    %21 = vector.load %arg2[%c0_11, %c2, %c0_12] : memref<1x4x128xf32, #tpu.memory_space<vmem>>, vector<1x1x128xf32>
    %22 = vector.shape_cast %21 : vector<1x1x128xf32> to vector<1x128xf32>
    %23 = vector.broadcast %20 : vector<4x1xf32> to vector<4x128xf32>
    %24 = vector.broadcast %22 : vector<1x128xf32> to vector<4x128xf32>
    %25 = arith.mulf %23, %24 : vector<4x128xf32>
    %26 = arith.addf %19, %25 : vector<4x128xf32>
    %27 = vector.extract_strided_slice %1 {offsets = [0, 3], sizes = [4, 1], strides = [1, 1]} : vector<4x4xf32> to vector<4x1xf32>
    %c0_13 = arith.constant 0 : index
    %c3 = arith.constant 3 : index
    %c0_14 = arith.constant 0 : index
    %28 = vector.load %arg2[%c0_13, %c3, %c0_14] : memref<1x4x128xf32, #tpu.memory_space<vmem>>, vector<1x1x128xf32>
    %29 = vector.shape_cast %28 : vector<1x1x128xf32> to vector<1x128xf32>
    %30 = vector.broadcast %27 : vector<4x1xf32> to vector<4x128xf32>
    %31 = vector.broadcast %29 : vector<1x128xf32> to vector<4x128xf32>
    %32 = arith.mulf %30, %31 : vector<4x128xf32>
    %33 = arith.addf %26, %32 : vector<4x128xf32>
    %c0_15 = arith.constant 0 : index
    %c0_16 = arith.constant 0 : index
    %c0_17 = arith.constant 0 : index
    %34 = vector.load %arg5[%c0_15, %c0_16, %c0_17] : memref<1x4x128xf32, #tpu.memory_space<vmem>>, vector<1x4x128xf32>
    %35 = vector.shape_cast %34 : vector<1x4x128xf32> to vector<4x128xf32>
    %36 = vector.shape_cast %33 : vector<4x128xf32> to vector<1x4x128xf32>
    tpu.vector_store %arg5[%c0_15, %c0_16, %c0_17], %36 {strides = array<i32>} : memref<1x4x128xf32, #tpu.memory_space<vmem>>, vector<1x4x128xf32>,
    return
  }
  func.func @transform_0(%arg0: i32, %arg1: i32) -> (i32, i32, i32) {
    %c0_i32 = arith.constant 0 : i32
    %c0_i32_0 = arith.constant 0 : i32
    return %arg0, %c0_i32, %arg1 : i32, i32, i32
  }
  func.func @transform_1(%arg0: i32, %arg1: i32) -> (i32, i32) {
    %c0_i32 = arith.constant 0 : i32
    %c0_i32_0 = arith.constant 0 : i32
    %c0_i32_1 = arith.constant 0 : i32
    return %c0_i32, %c0_i32_0 : i32, i32
  }
  func.func @transform_2(%arg0: i32, %arg1: i32) -> (i32, i32) {
    %c0_i32 = arith.constant 0 : i32
    %c0_i32_0 = arith.constant 0 : i32
    %c0_i32_1 = arith.constant 0 : i32
    return %c0_i32, %c0_i32_0 : i32, i32
  }
  func.func @transform_3(%arg0: i32, %arg1: i32) -> (i32, i32, i32) {
    %c0_i32 = arith.constant 0 : i32
    %c0_i32_0 = arith.constant 0 : i32
    return %arg0, %c0_i32, %arg1 : i32, i32, i32
  }
}

</mosaic_0001>

<llo_original>
// kernel: tpu_custom_call.1
$region0: #{tpu_custom_call.1}
  #allocation0 [shape = 'u32[]', space=smem, size = 0x4, offset = 0x4, fixed_abs, tag = 'smem constant byte address 0x4 - core index']
  #allocation1 [shape = 'u32[144,128]{1,0:T(1,128)}', space=vmem, size = 0x12000, scoped, tag = 'internal scratch']
  %s0 = inlined_call_operand.hbm [shape: f32[2,4,256], index: 0, kind: input, shape index: {}]
  %s1 = inlined_call_operand.vmem [shape: f32[4,4], index: 1, kind: input, shape index: {}]
  %s2 = inlined_call_operand.vmem [shape: f32[4,1], index: 2, kind: input, shape index: {}]
  %s3 = inlined_call_operand.hbm [shape: f32[2,4,256], index: 3, kind: output, shape index: {}]
  %s4 = sld [smem:[#allocation0]]
  $region49: #{tpu_custom_call.1} parent=0
    _
  %s6 = ssub.s32 1, %s4
  %s7 = scalar_select 0, %s6, %s4
  $region1: #{tpu_custom_call.1} parent=0
    #allocation2 [shape = 'u8[4096]{0}', space=vmem, size = 0x1000, scoped, tag = 'input window, operand 0']
    #allocation3 [shape = 's32[2]{0}', space=sflag, size = 0x8, scoped, tag = 'scoped memory for tpu_custom_call.1']
    #allocation4 [shape = 's32[2]{0}', space=sflag, size = 0x8, scoped, tag = 'scoped memory for tpu_custom_call.1']
    #allocation5 [shape = 'u8[4096]{0}', space=vmem, size = 0x1000, scoped, tag = 'output window, operand 0']
    %8 = vsyncpa [#allocation3], 0
    %s9 = scalar_lea.sflag [#allocation3], 1
    %10 = vsyncpa %s9, 0
    %11 = vsyncpa [#allocation4], 0
    %s12 = scalar_lea.sflag [#allocation4], 1
    %13 = vsyncpa %s12, 0
    loop: start=0, step=1, limit=6
    $region2: #{tpu_custom_call.1} parent=1 // loop_pre_header
      _
    $region3: #{tpu_custom_call.1} parent=1 // loop_header
      %s15 = sphi 0, %s19
      %p16 = scmp.ge.s32.totalorder %s15, 6
      %s22 = sphi 0, %s34
      %s23 = sphi 0, %s30
      %s24 = sphi 0, %s22
      %s25 = sphi 0, %s23
      %s26 = sphi 0, %s24
      %s27 = sphi 0, %s25
      %s39 = sphi 0, %s41
      %s42 = sphi 0, %s39
      %s43 = sphi 0, %s42
      %s59 = sphi 0, %s43
      %s63 = sphi 0, %s63
      %s65 = sphi 0, %s63
      %s66 = sphi 0, %s65
      %s80 = sphi 0, %s66
      %s84 = sphi 0, %s84
      %s86 = sphi 0, %s84
      %s87 = sphi 0, %s86
      %s101 = sphi 0, %s87
      %s109 = sphi 0, %s111
      %s112 = sphi 0, %s109
      %s113 = sphi 0, %s112
      %s129 = sphi 0, %s113
    $region4: #{tpu_custom_call.1} parent=1 // loop_header_branch
      %18 = sbr.rel (%p16) target = $region8
    $region5: #{tpu_custom_call.1} parent=1 // loop_body
      %s20 = ssub.s32 %s15, 1
      %s21 = ssub.s32 %s15, 2
      %s28 = sadd.s32 1, %s23
      %p29 = scmp.ge.s32.totalorder %s28, 2
      %s30 = scalar_select %p29, 0, %s28
      %s31 = sadd.s32 1, %s22
      %s32 = scalar_select %p29, %s31, %s22
      %p33 = scmp.ge.s32.totalorder %s32, 2
      %s34 = scalar_select %p33, 0, %s32
      %s35 = ssub.s32 %s22, %s34
      %s36 = ssub.s32 %s23, %s30
      %s37 = sor.u32 %s35, %s36
      %p38 = scmp.eq.s32.totalorder %s37, 0
      %s40 = sadd.s32 %s39, 1
      %s41 = scalar_select %p38, %s39, %s40
      %p44 = pneg %p38
      %p45 = scmp.eq.s32.totalorder %s15, 3
      %p46 = por %p44, %p45
      %p47 = scmp.ne.s32.totalorder %s39, %s42
      %p48 = scmp.eq.s32.totalorder %s15, 0
      %p49 = por %p47, %p48
      %p50 = scmp.ne.s32.totalorder %s39, %s42
      %p51 = scmp.eq.s32.totalorder %s20, 3
      %p52 = por %p50, %p51
      %p53 = scmp.ne.s32.totalorder %s42, %s43
      %p54 = scmp.eq.s32.totalorder %s20, 0
      %p55 = por %p53, %p54
      %p56 = scmp.ne.s32.totalorder %s42, %s43
      %p57 = scmp.eq.s32.totalorder %s21, 3
      %p58 = por %p56, %p57
      %p60 = scmp.ne.s32.totalorder %s43, %s59
      %p61 = scmp.eq.s32.totalorder %s21, 0
      %p62 = por %p60, %p61
      %s64 = sadd.s32 %s63, 1
      %p67 = scmp.eq.s32.totalorder %s15, 3
      %p68 = scmp.ne.s32.totalorder %s63, %s65
      %p69 = scmp.eq.s32.totalorder %s15, 0
      %p70 = por %p68, %p69
      %p71 = scmp.ne.s32.totalorder %s63, %s65
      %p72 = scmp.eq.s32.totalorder %s20, 3
      %p73 = por %p71, %p72
      %p74 = scmp.ne.s32.totalorder %s65, %s66
      %p75 = scmp.eq.s32.totalorder %s20, 0
      %p76 = por %p74, %p75
      %p77 = scmp.ne.s32.totalorder %s65, %s66
      %p78 = scmp.eq.s32.totalorder %s21, 3
      %p79 = por %p77, %p78
      %p81 = scmp.ne.s32.totalorder %s66, %s80
      %p82 = scmp.eq.s32.totalorder %s21, 0
      %p83 = por %p81, %p82
      %s85 = sadd.s32 %s84, 1
      %p88 = scmp.eq.s32.totalorder %s15, 3
      %p89 = scmp.ne.s32.totalorder %s84, %s86
      %p90 = scmp.eq.s32.totalorder %s15, 0
      %p91 = por %p89, %p90
      %p92 = scmp.ne.s32.totalorder %s84, %s86
      %p93 = scmp.eq.s32.totalorder %s20, 3
      %p94 = por %p92, %p93
      %p95 = scmp.ne.s32.totalorder %s86, %s87
      %p96 = scmp.eq.s32.totalorder %s20, 0
      %p97 = por %p95, %p96
      %p98 = scmp.ne.s32.totalorder %s86, %s87
      %p99 = scmp.eq.s32.totalorder %s21, 3
      %p100 = por %p98, %p99
      %p102 = scmp.ne.s32.totalorder %s87, %s101
      %p103 = scmp.eq.s32.totalorder %s21, 0
      %p104 = por %p102, %p103
      %s105 = ssub.s32 %s22, %s34
      %s106 = ssub.s32 %s23, %s30
      %s107 = sor.u32 %s105, %s106
      %p108 = scmp.eq.s32.totalorder %s107, 0
      %s110 = sadd.s32 %s109, 1
      %s111 = scalar_select %p108, %s109, %s110
      %p114 = pneg %p108
      %p115 = scmp.eq.s32.totalorder %s15, 3
      %p116 = por %p114, %p115
      %p117 = scmp.ne.s32.totalorder %s109, %s112
      %p118 = scmp.eq.s32.totalorder %s15, 0
      %p119 = por %p117, %p118
      %p120 = scmp.ne.s32.totalorder %s109, %s112
      %p121 = scmp.eq.s32.totalorder %s20, 3
      %p122 = por %p120, %p121
      %p123 = scmp.ne.s32.totalorder %s112, %s113
      %p124 = scmp.eq.s32.totalorder %s20, 0
      %p125 = por %p123, %p124
      %p126 = scmp.ne.s32.totalorder %s112, %s113
      %p127 = scmp.eq.s32.totalorder %s21, 3
      %p128 = por %p126, %p127
      %p130 = scmp.ne.s32.totalorder %s113, %s129
      %p131 = scmp.eq.s32.totalorder %s21, 0
      %p132 = por %p130, %p131
      %p133 = scmp.le.s32.totalorder 1, %s15
      %p134 = scmp.lt.s32.totalorder %s15, 5
      %p135 = pnand %p133, %p134
      %p136 = pneg %p135
      // Predicated region
      $region9: #{tpu_custom_call.1} parent=5 // pred_check
        _
      $region10: #{tpu_custom_call.1} parent=5 // pred_check_branch
        %138 = sbr.rel (%p135) target = $region12
      $region11: #{tpu_custom_call.1} parent=5 // pred_region
        %s139 = ssub.s32 %s15, 1
        // Predicated region
        $region13: #{tpu_custom_call.1} parent=11 // pred_check
          %p140 = pneg %p76
        $region14: #{tpu_custom_call.1} parent=11 // pred_check_branch
          %142 = sbr.rel (%p140) target = $region16
        $region15: #{tpu_custom_call.1} parent=11 // pred_region
          _
        $region16: #{tpu_custom_call.1} parent=11 // pred_fallthru
          _
        // Predicated region
        $region17: #{tpu_custom_call.1} parent=11 // pred_check
          %p143 = pneg %p97
        $region18: #{tpu_custom_call.1} parent=11 // pred_check_branch
          %145 = sbr.rel (%p143) target = $region20
        $region19: #{tpu_custom_call.1} parent=11 // pred_region
          _
        $region20: #{tpu_custom_call.1} parent=11 // pred_fallthru
          _
      $region12: #{tpu_custom_call.1} parent=5 // pred_fallthru
        _
      %p146 = scmp.lt.s32.totalorder %s15, 4
      // Predicated region
      $region21: #{tpu_custom_call.1} parent=5 // pred_check
        %p147 = pneg %p146
      $region22: #{tpu_custom_call.1} parent=5 // pred_check_branch
        %149 = sbr.rel (%p147) target = $region24
      $region23: #{tpu_custom_call.1} parent=5 // pred_region
        // Predicated region
        $region25: #{tpu_custom_call.1} parent=23 // pred_check
          %p150 = pneg %p49
        $region26: #{tpu_custom_call.1} parent=23 // pred_check_branch
          %152 = sbr.rel (%p150) target = $region28
        $region27: #{tpu_custom_call.1} parent=23 // pred_region
          %s153 = sand.u32 %s39, 1
          %s154 = scalar_lea.sflag [#allocation3], %s153
          %s155 = sand.u32 %s39, 1
          %s156 = smul.addr %s155, 4
          %s157 = scalar_lea.vmem [#allocation2], %s156
          %s159 = ssub.s32 64, 64
          %160 = vsyncadd %s154, %s159
          %s161 = smul.addr %s22, 2
          %s162 = sadd.s32 %s23, %s161
          %s163 = smul.addr %s162, 64
          %s164 = scalar_lea.hbm %s0, %s163
          %s166 = sshll.u32 %s157, 4
          %s167 = int_to_ptr.vmem [resolvable:$true] %s166
          %169 = dma.hbm_to_vmem [thread:$0]  %s164, 64, %s167, %s154
        $region28: #{tpu_custom_call.1} parent=23 // pred_fallthru
          _
      $region24: #{tpu_custom_call.1} parent=5 // pred_fallthru
        _
      %p170 = scmp.le.s32.totalorder 1, %s15
      %p171 = scmp.lt.s32.totalorder %s15, 5
      %p172 = pnand %p170, %p171
      %p173 = pneg %p172
      // Predicated region
      $region29: #{tpu_custom_call.1} parent=5 // pred_check
        _
      $region30: #{tpu_custom_call.1} parent=5 // pred_check_branch
        %175 = sbr.rel (%p172) target = $region32
      $region31: #{tpu_custom_call.1} parent=5 // pred_region
        %s176 = ssub.s32 %s15, 1
        %s177 = sand.u32 %s42, 1
        %s178 = scalar_lea.sflag [#allocation3], %s177
        %s179 = sand.u32 %s42, 1
        %s180 = smul.addr %s179, 4
        %s181 = scalar_lea.vmem [#allocation2], %s180
        // Predicated region
        $region33: #{tpu_custom_call.1} parent=31 // pred_check
          %p182 = pneg %p55
        $region34: #{tpu_custom_call.1} parent=31 // pred_check_branch
          %184 = sbr.rel (%p182) target = $region36
        $region35: #{tpu_custom_call.1} parent=31 // pred_region
          %185 = dma.done %s178, 64
        $region36: #{tpu_custom_call.1} parent=31 // pred_fallthru
          _
        %s186 = sand.u32 %s42, 1
        %s187 = scalar_lea.sflag [#allocation3], %s186
        %s188 = sand.u32 %s42, 1
        %s189 = smul.addr %s188, 4
        %s190 = scalar_lea.vmem [#allocation2], %s189
        %p191 = pneg %p55
        %p192 = pneg %p52
        %p193 = pneg %p76
        %p194 = pneg %p73
        %p195 = pneg %p97
        %p196 = pneg %p94
        %p197 = pneg %p125
        %p198 = pneg %p122
        %s199 = sand.u32 %s112, 1
        %s200 = scalar_lea.sflag [#allocation4], %s199
        %s201 = sand.u32 %s112, 1
        %s202 = smul.addr %s201, 4
        %s203 = scalar_lea.vmem [#allocation5], %s202
        %v204 = vld [vmem:[%s2] sm:$0xf]
        %v205 = vld [vmem:[%s1] sm:$0xf]
        %v206 = vld [vmem:[%s181] sm:$0xf]
        %208 = vset.pattern.permute.xlu0 0
        %209 = vperm.xlu0 %208, %v204
        %v210 = vpop.permute.xlu0 %209
        %v212 = vadd.f32 %v206, %v210
        %v213 = vld [vmem:[%s181] sm:$0x1]
        %215 = vset.pattern.permute.xlu0 0
        %216 = vperm.xlu0 %215, %v205
        %v217 = vpop.permute.xlu0 %216
        %v219 = vlaneseq
        %v220 = vshrl.u32 %v219, 7
        %v221 = vsub.s32 0, %v220
        %v222 = vrot.slane %v213, %v221
        %v223 = vmul.f32 %v217, %v222
        %v224 = vadd.f32 %v212, %v223
        %v225 = vld [vmem:[%s181 + $0x1] sm:$0x1]
        %226 = vset.pattern.permute.xlu0 1
        %227 = vperm.xlu0 %226, %v205
        %v228 = vpop.permute.xlu0 %227
        %v230 = vlaneseq
        %v231 = vshrl.u32 %v230, 7
        %v232 = vsub.s32 0, %v231
        %v233 = vrot.slane %v225, %v232
        %v234 = vmul.f32 %v228, %v233
        %v235 = vadd.f32 %v224, %v234
        %v236 = vld [vmem:[%s181 + $0x2] sm:$0x1]
        %237 = vset.pattern.permute.xlu0 2
        %238 = vperm.xlu0 %237, %v205
        %v239 = vpop.permute.xlu0 %238
        %v241 = vlaneseq
        %v242 = vshrl.u32 %v241, 7
        %v243 = vsub.s32 0, %v242
        %v244 = vrot.slane %v236, %v243
        %v245 = vmul.f32 %v239, %v244
        %v246 = vadd.f32 %v235, %v245
        %v247 = vld [vmem:[%s181 + $0x3] sm:$0x1]
        %248 = vset.pattern.permute.xlu0 3
        %249 = vperm.xlu0 %248, %v205
        %v250 = vpop.permute.xlu0 %249
        %v252 = vlaneseq
        %v253 = vshrl.u32 %v252, 7
        %v254 = vsub.s32 0, %v253
        %v255 = vrot.slane %v247, %v254
        %v256 = vmul.f32 %v250, %v255
        %v257 = vadd.f32 %v246, %v256
        %258 = vst [vmem:[%s203] sm:$0xf] %v257
        %s259 = sand.u32 %s112, 1
        %s260 = scalar_lea.sflag [#allocation4], %s259
        %s261 = sand.u32 %s112, 1
        %s262 = smul.addr %s261, 4
        %s263 = scalar_lea.vmem [#allocation5], %s262
        // Predicated region
        $region37: #{tpu_custom_call.1} parent=31 // pred_check
          %p264 = pneg %p122
        $region38: #{tpu_custom_call.1} parent=31 // pred_check_branch
          %266 = sbr.rel (%p264) target = $region40
        $region39: #{tpu_custom_call.1} parent=31 // pred_region
          %s268 = ssub.s32 64, 64
          %269 = vsyncadd %s260, %s268
          %s270 = smul.addr %s24, 2
          %s271 = sadd.s32 %s25, %s270
          %s272 = smul.addr %s271, 64
          %s273 = scalar_lea.hbm %s3, %s272
          %s275 = sshll.u32 %s263, 4
          %s276 = int_to_ptr.vmem [resolvable:$true] %s275
          %278 = dma.vmem_to_hbm [thread:$0]  %s276, 64, %s273, %s260
        $region40: #{tpu_custom_call.1} parent=31 // pred_fallthru
          _
      $region32: #{tpu_custom_call.1} parent=5 // pred_fallthru
        _
      %p279 = scmp.le.s32.totalorder 2, %s15
      // Predicated region
      $region41: #{tpu_custom_call.1} parent=5 // pred_check
        %p280 = pneg %p279
      $region42: #{tpu_custom_call.1} parent=5 // pred_check_branch
        %282 = sbr.rel (%p280) target = $region44
      $region43: #{tpu_custom_call.1} parent=5 // pred_region
        %s283 = ssub.s32 %s15, 2
        // Predicated region
        $region45: #{tpu_custom_call.1} parent=43 // pred_check
          %p284 = pneg %p128
        $region46: #{tpu_custom_call.1} parent=43 // pred_check_branch
          %286 = sbr.rel (%p284) target = $region48
        $region47: #{tpu_custom_call.1} parent=43 // pred_region
          %s287 = sand.u32 %s113, 1
          %s288 = scalar_lea.sflag [#allocation4], %s287
          %s289 = sand.u32 %s113, 1
          %s290 = smul.addr %s289, 4
          %s291 = scalar_lea.vmem [#allocation5], %s290
          %292 = dma.done %s288, 64
        $region48: #{tpu_custom_call.1} parent=43 // pred_fallthru
          _
      $region44: #{tpu_custom_call.1} parent=5 // pred_fallthru
        _
    $region6: #{tpu_custom_call.1} parent=1 // loop_footer
      %s19 = sadd.s32 1, %s15
    $region7: #{tpu_custom_call.1} parent=1 // loop_footer_branch
      %14 = sbr.rel target = $region3
    $region8: #{tpu_custom_call.1} parent=1 // loop_exit
      _
    %293 = vsyncpa [#allocation3], 1
    %s294 = scalar_lea.sflag [#allocation3], 1
    %295 = vsyncpa %s294, 1
    %296 = vsyncpa [#allocation4], 1
    %s297 = scalar_lea.sflag [#allocation4], 1
    %298 = vsyncpa %s297, 1

</llo_original>
